<compile_context>
chip_gen: v5e
topology: v5e:2x2
jax: 0.10.0
libtpu: 0.0.40
codegen_flags: <defaults>
</compile_context>

<pallas_src>
import functools
import math

import jax
import jax.numpy as jnp
from jax.experimental import pallas as pl
from jax.experimental.pallas import tpu as pltpu

LANE = 128


def _round_up(x, m):
    return ((x + m - 1) // m) * m


def _pad2d(a, rows, cols):
    r, c = a.shape
    return jnp.pad(a, ((0, rows - r), (0, cols - c)))


# ---------------------------------------------------------------------------
# Kernel 1: feature transform  XW = X @ W   (row-tiled; hoisted out of the
# N x N aggregation so the big matmul only sees the narrow XW product).
# ---------------------------------------------------------------------------
def _transform_kernel(x_ref, w_ref, o_ref):
    o_ref[...] = jnp.dot(x_ref[...], w_ref[...],
                         preferred_element_type=jnp.float32).astype(o_ref.dtype)


def transform(x, w, *, tm):
    n, f_in = x.shape
    f_out = w.shape[1]
    return pl.pallas_call(
        _transform_kernel,
        out_shape=jax.ShapeDtypeStruct((n, f_out), jnp.bfloat16),
        grid=(n // tm,),
        in_specs=[pl.BlockSpec((tm, f_in), lambda i: (i, 0)),
                  pl.BlockSpec((f_in, f_out), lambda i: (0, 0))],
        out_specs=pl.BlockSpec((tm, f_out), lambda i: (i, 0)),
        compiler_params=pltpu.CompilerParams(dimension_semantics=("parallel",)),
    )(x, w)


# ---------------------------------------------------------------------------
# Kernel 2: aggregation  H = A_hat @ XW + bias, then ReLU / dropout epilogue.
# Grid: (node-row tiles, reduction over A_hat column tiles).
# XW is fully VMEM-resident (constant index_map); A_hat is the only streamed
# operand. Accumulation is f32 — directly in the output block when the output
# is f32, otherwise in a VMEM scratch.
# ---------------------------------------------------------------------------
def _aggregate_kernel(a_ref, xw_ref, b_ref, mask_ref, o_ref, *scratch, tk,
                      apply_relu, apply_dropout, acc_in_out):
    k = pl.program_id(1)
    acc_ref = o_ref if acc_in_out else scratch[0]

    @pl.when(k == 0)
    def _():
        acc_ref[...] = jnp.zeros_like(acc_ref)

    start = pl.multiple_of(k * tk, tk)
    xw_tile = xw_ref[pl.ds(start, tk), :]          # K-slice of resident XW
    acc_ref[...] += jnp.dot(a_ref[...], xw_tile,
                            preferred_element_type=jnp.float32)

    @pl.when(k == pl.num_programs(1) - 1)
    def _():
        h = acc_ref[...] + b_ref[...]
        if apply_relu:
            h = jnp.maximum(h, 0.0)
        if apply_dropout:
            h = h * mask_ref[...].astype(jnp.float32)   # pre-scaled keep/(1-p)
        o_ref[...] = h.astype(o_ref.dtype)


def aggregate(a_hat, xw, bias, mask, *, tm, tk, apply_relu, apply_dropout,
              out_dtype):
    n = a_hat.shape[0]                 # padded node count (multiple of tm & tk)
    f_out = xw.shape[1]                # padded feature width (multiple of 128)
    acc_in_out = jnp.dtype(out_dtype) == jnp.dtype(jnp.float32)

    if apply_dropout:
        mask_spec = pl.BlockSpec((tm, f_out), lambda i, k: (i, 0))
    else:  # dummy 1-row mask, never read inside the kernel
        mask_spec = pl.BlockSpec((mask.shape[0], f_out), lambda i, k: (0, 0))

    kernel = functools.partial(_aggregate_kernel, tk=tk,
                               apply_relu=apply_relu,
                               apply_dropout=apply_dropout,
                               acc_in_out=acc_in_out)
    scratch_shapes = [] if acc_in_out else [pltpu.VMEM((tm, f_out), jnp.float32)]

    # Explicit VMEM budget (review: default scoped limit differs per chip, and
    # v7x only has 64 MiB physical per TC). Conservative x2 on buffered specs.
    out_bytes = jnp.dtype(out_dtype).itemsize
    vmem_est = (2 * xw.size * 2                      # resident XW (bf16)
                + 2 * tm * tk * 2                    # A_hat tile (bf16)
                + 2 * tm * f_out * mask.dtype.itemsize
                + 2 * tm * f_out * out_bytes
                + tm * f_out * 4                     # f32 accumulator
                + 2 * f_out * 4)                     # bias
    vmem_limit = min(max(_round_up(vmem_est, 1 << 20) + (8 << 20), 32 << 20),
                     100 << 20)

    return pl.pallas_call(
        kernel,
        out_shape=jax.ShapeDtypeStruct((n, f_out), out_dtype),
        grid=(n // tm, n // tk),
        in_specs=[
            pl.BlockSpec((tm, tk), lambda i, k: (i, k)),      # A_hat tile (bf16)
            pl.BlockSpec((n, f_out), lambda i, k: (0, 0)),    # XW, VMEM-resident
            pl.BlockSpec((1, f_out), lambda i, k: (0, 0)),    # bias (f32)
            mask_spec,                                        # dropout mask (bf16)
        ],
        out_specs=pl.BlockSpec((tm, f_out), lambda i, k: (i, 0)),
        scratch_shapes=scratch_shapes,
        compiler_params=pltpu.CompilerParams(
            dimension_semantics=("parallel", "arbitrary"),
            vmem_limit_bytes=vmem_limit),
    )(a_hat, xw, bias, mask)


# ---------------------------------------------------------------------------
# One GraphConv layer (glue):  dropout?( relu?( A_hat X W + b ) )
# ---------------------------------------------------------------------------
def graph_conv(a_hat_bf16, x_bf16, w, b, drop_mask, *, apply_relu,
               apply_dropout, tm, tk, out_dtype):
    f_in = x_bf16.shape[1]
    f_out = w.shape[1]
    f_pad = _round_up(f_out, LANE)
    w_pad = _pad2d(w, f_in, f_pad).astype(jnp.bfloat16)   # pad rows & cols
    b_pad = jnp.pad(b.reshape(1, -1).astype(jnp.float32),
                    ((0, 0), (0, f_pad - f_out)))
    xw = transform(x_bf16, w_pad, tm=tm)                  # (n_pad, f_pad) bf16
    return aggregate(a_hat_bf16, xw, b_pad, drop_mask, tm=tm, tk=tk,
                     apply_relu=apply_relu, apply_dropout=apply_dropout,
                     out_dtype=out_dtype)


# ---------------------------------------------------------------------------
# A_hat preparation — done ONCE outside the forward pass (hoisted cast + pad).
# ---------------------------------------------------------------------------
def prepare_adjacency(a_hat, *, tm=256, tk=512):
    """Zero-pad the normalized adjacency to a tile-aligned square and cast to
    bf16. Padded rows/cols are zero, so they do not affect real nodes."""
    n = a_hat.shape[0]
    n_pad = _round_up(n, math.lcm(tm, tk))
    return _pad2d(a_hat.astype(jnp.float32), n_pad, n_pad).astype(jnp.bfloat16)


# ---------------------------------------------------------------------------
# GCN forward
# ---------------------------------------------------------------------------
def gcn_forward(a_hat_bf16, features, params, *, dropout_rate=0.5,
                training=True, rng=None, tm=256, tk=512):
    """a_hat_bf16 must come from prepare_adjacency(..., tm=tm, tk=tk)."""
    w1, b1, w2, b2 = params
    n, f_in = features.shape
    n_pad = a_hat_bf16.shape[0]
    hidden = w1.shape[1]
    num_classes = w2.shape[1]
    h_pad = _round_up(hidden, LANE)
    c_pad = _round_up(num_classes, LANE)

    x_pad = _pad2d(features, n_pad, f_in).astype(jnp.bfloat16)

    apply_dropout = bool(training) and dropout_rate > 0.0
    if rng is None:
        rng = jax.random.PRNGKey(0)
    k1, k2 = jax.random.split(rng)

    def make_mask(k, cols):
        if not apply_dropout:
            return jnp.ones((1, cols), jnp.bfloat16)          # dummy, unused
        keep = jax.random.bernoulli(k, 1.0 - dropout_rate, (n_pad, cols))
        scale = 1.0 / (1.0 - dropout_rate)
        return (keep.astype(jnp.float32) * scale).astype(jnp.bfloat16)

    mask1 = make_mask(k1, h_pad)
    mask2 = make_mask(k2, c_pad)

    # layer 1: dropout(relu(A X W1 + b1)) — hidden activation stored in bf16
    h1 = graph_conv(a_hat_bf16, x_pad, w1, b1, mask1,
                    apply_relu=True, apply_dropout=apply_dropout,
                    tm=tm, tk=tk, out_dtype=jnp.bfloat16)

    # layer 2: dropout(A h1 W2 + b2) — logits in f32
    h2 = graph_conv(a_hat_bf16, h1, w2, b2, mask2,
                    apply_relu=False, apply_dropout=apply_dropout,
                    tm=tm, tk=tk, out_dtype=jnp.float32)
    return h2[:n, :num_classes]


# ---------------------------------------------------------------------------
# Deterministic synthetic data / params
# ---------------------------------------------------------------------------
def build_normalized_adjacency(key, num_nodes):
    """Synthetic undirected graph with self-loops; A_hat = D^-1/2 A D^-1/2."""
    r = jax.random.uniform(key, (num_nodes, num_nodes))
    a = (r < 0.05).astype(jnp.float32)
    a = jnp.maximum(a, a.T)                      # symmetric
    a = jnp.maximum(a, jnp.eye(num_nodes))       # self loops -> no zero degree
    deg = jnp.sum(a, axis=1)
    d_inv_sqrt = 1.0 / jnp.sqrt(deg)
    return a * d_inv_sqrt[:, None] * d_inv_sqrt[None, :]


def init_params(key, in_feats, hidden_size, num_classes):
    """Xavier-uniform weights (as DGL GraphConv), zero bias. Deterministic."""
    k1, k2 = jax.random.split(key)

    def xavier(k, fan_in, fan_out):
        limit = jnp.sqrt(6.0 / (fan_in + fan_out))
        return jax.random.uniform(k, (fan_in, fan_out), jnp.float32, -limit, limit)

    w1 = xavier(k1, in_feats, hidden_size)
    b1 = jnp.zeros((hidden_size,), jnp.float32)
    w2 = xavier(k2, hidden_size, num_classes)
    b2 = jnp.zeros((num_classes,), jnp.float32)
    return (w1, b1, w2, b2)


if __name__ == "__main__":
    # Small shapes consistent with the module (Cora scaled down):
    NUM_NODES = 256
    IN_FEATS = 32
    HIDDEN_SIZE = 32      # original uses 256; kept small per instructions
    NUM_CLASSES = 8
    DROPOUT_RATE = 0.5
    TM, TK = 256, 512     # review defaults (v6e/v7x); N is padded to lcm(TM,TK)

    key = jax.random.PRNGKey(0)
    k_graph, k_feat, k_param, k_drop = jax.random.split(key, 4)

    a_hat = build_normalized_adjacency(k_graph, NUM_NODES)
    features = jax.random.normal(k_feat, (NUM_NODES, IN_FEATS), jnp.float32)
    params = init_params(k_param, IN_FEATS, HIDDEN_SIZE, NUM_CLASSES)

    # A_hat cast/pad hoisted out of the per-step forward (done once).
    a_hat_bf16 = prepare_adjacency(a_hat, tm=TM, tk=TK)

    logits = gcn_forward(a_hat_bf16, features, params,
                         dropout_rate=DROPOUT_RATE, training=True, rng=k_drop,
                         tm=TM, tk=TK)
    jax.block_until_ready(logits)

    assert logits.shape == (NUM_NODES, NUM_CLASSES)
    assert logits.dtype == jnp.float32
    assert bool(jnp.all(jnp.isfinite(logits)))
    print("KERNEL_OK")
</pallas_src>

<mosaic_0001>
module attributes {stable_mosaic.version = 11 : i64} {
  func.func @_transform_kernel(%arg0: i32, %arg1: memref<256x32xbf16, #tpu.memory_space<vmem>>, %arg2: memref<32x128xbf16, #tpu.memory_space<vmem>>, %arg3: memref<256x128xbf16, #tpu.memory_space<vmem>>) attributes {dimension_semantics = [#tpu.dimension_semantics<parallel>], iteration_bounds = array<i64: 2>, scalar_prefetch = 0 : i64, scratch_operands = 0 : i64, tpu.core_type = #tpu.core_type<tc>, window_params = [{transform_indices = @transform_0, window_bounds = array<i64: 256, 32>}, {pipeline_mode = #tpu.pipeline_mode<synchronous>, transform_indices = @transform_1, window_bounds = array<i64: 32, 128>}, {transform_indices = @transform_2, window_bounds = array<i64: 256, 128>}]} {
    %c0 = arith.constant 0 : index
    %c0_0 = arith.constant 0 : index
    %0 = vector.load %arg1[%c0, %c0_0] : memref<256x32xbf16, #tpu.memory_space<vmem>>, vector<256x32xbf16>
    %c0_1 = arith.constant 0 : index
    %c0_2 = arith.constant 0 : index
    %1 = vector.load %arg2[%c0_1, %c0_2] : memref<32x128xbf16, #tpu.memory_space<vmem>>, vector<32x128xbf16>
    %cst = arith.constant dense<0.000000e+00> : vector<256x128xf32>
    %2 = tpu.matmul %0, %1, %cst {dimension_numbers = #tpu.dot_dimension_numbers<[1], [0], [0], [1], [0, 0, 1, 1], [], []>} : vector<256x32xbf16>, vector<32x128xbf16>, vector<256x128xf32> -> vector<256x128xf32>
    %3 = arith.truncf %2 : vector<256x128xf32> to vector<256x128xbf16>
    %c0_3 = arith.constant 0 : index
    %c0_4 = arith.constant 0 : index
    %4 = vector.load %arg3[%c0_3, %c0_4] : memref<256x128xbf16, #tpu.memory_space<vmem>>, vector<256x128xbf16>
    tpu.vector_store %arg3[%c0_3, %c0_4], %3 {strides = array<i32>} : memref<256x128xbf16, #tpu.memory_space<vmem>>, vector<256x128xbf16>,
    return
  }
  func.func @transform_0(%arg0: i32) -> (i32, i32) {
    %c0_i32 = arith.constant 0 : i32
    %c0_i32_0 = arith.constant 0 : i32
    return %arg0, %c0_i32 : i32, i32
  }
  func.func @transform_1(%arg0: i32) -> (i32, i32) {
    %c0_i32 = arith.constant 0 : i32
    %c0_i32_0 = arith.constant 0 : i32
    %c0_i32_1 = arith.constant 0 : i32
    return %c0_i32, %c0_i32_0 : i32, i32
  }
  func.func @transform_2(%arg0: i32) -> (i32, i32) {
    %c0_i32 = arith.constant 0 : i32
    %c0_i32_0 = arith.constant 0 : i32
    return %arg0, %c0_i32 : i32, i32
  }
}

</mosaic_0001>

<llo_original>
// kernel: tpu_custom_call.1
$region0: #{tpu_custom_call.1}
  #allocation0 [shape = 'u32[]', space=smem, size = 0x4, offset = 0x4, fixed_abs, tag = 'smem constant byte address 0x4 - core index']
  #allocation1 [shape = 'u32[72,128]{1,0:T(1,128)}', space=vmem, size = 0x9000, scoped, tag = 'internal scratch']
  %s0 = inlined_call_operand.vmem [shape: bf16[512,32], index: 0, kind: input, shape index: {}]
  %s1 = inlined_call_operand.vmem [shape: bf16[32,128], index: 1, kind: input, shape index: {}]
  %s2 = inlined_call_operand.hbm [shape: bf16[512,128], index: 2, kind: output, shape index: {}]
  %s3 = sld [smem:[#allocation0]]
  $region41: #{tpu_custom_call.1} parent=0
    _
  %s5 = ssub.s32 1, %s3
  %s6 = scalar_select 0, %s5, %s3
  $region1: #{tpu_custom_call.1} parent=0
    #allocation2 [shape = 'u8[131072]{0}', space=vmem, size = 0x20000, scoped, tag = 'output window, operand 0']
    #allocation3 [shape = 's32[2]{0}', space=sflag, size = 0x8, scoped, tag = 'scoped memory for tpu_custom_call.1']
    %7 = vsyncpa [#allocation3], 0
    %s8 = scalar_lea.sflag [#allocation3], 1
    %9 = vsyncpa %s8, 0
    loop: start=0, step=1, limit=4
    $region2: #{tpu_custom_call.1} parent=1 // loop_pre_header
      _
    $region3: #{tpu_custom_call.1} parent=1 // loop_header
      %s11 = sphi 0, %s15
      %p12 = scmp.ge.s32.totalorder %s11, 4
      %s21 = sphi 0, %s23
      %s24 = sphi 0, %s21
      %s25 = sphi 0, %s24
      %s41 = sphi 0, %s25
      %s45 = sphi 0, %s45
      %s47 = sphi 0, %s45
      %s48 = sphi 0, %s47
      %s62 = sphi 0, %s48
      %s68 = sphi 0, %s70
      %s71 = sphi 0, %s68
      %s72 = sphi 0, %s71
      %s88 = sphi 0, %s72
    $region4: #{tpu_custom_call.1} parent=1 // loop_header_branch
      %14 = sbr.rel (%p12) target = $region8
    $region5: #{tpu_custom_call.1} parent=1 // loop_body
      %s16 = ssub.s32 %s11, 1
      %s17 = ssub.s32 %s11, 2
      %s18 = sadd.s32 %s11, 1
      %s19 = ssub.s32 %s11, %s18
      %p20 = scmp.eq.s32.totalorder %s19, 0
      %s22 = sadd.s32 %s21, 1
      %s23 = scalar_select %p20, %s21, %s22
      %p26 = pneg %p20
      %p27 = scmp.eq.s32.totalorder %s11, 1
      %p28 = por %p26, %p27
      %p29 = scmp.ne.s32.totalorder %s21, %s24
      %p30 = scmp.eq.s32.totalorder %s11, 0
      %p31 = por %p29, %p30
      %p32 = scmp.ne.s32.totalorder %s21, %s24
      %p33 = scmp.eq.s32.totalorder %s16, 1
      %p34 = por %p32, %p33
      %p35 = scmp.ne.s32.totalorder %s24, %s25
      %p36 = scmp.eq.s32.totalorder %s16, 0
      %p37 = por %p35, %p36
      %p38 = scmp.ne.s32.totalorder %s24, %s25
      %p39 = scmp.eq.s32.totalorder %s17, 1
      %p40 = por %p38, %p39
      %p42 = scmp.ne.s32.totalorder %s25, %s41
      %p43 = scmp.eq.s32.totalorder %s17, 0
      %p44 = por %p42, %p43
      %s46 = sadd.s32 %s45, 1
      %p49 = scmp.eq.s32.totalorder %s11, 1
      %p50 = scmp.ne.s32.totalorder %s45, %s47
      %p51 = scmp.eq.s32.totalorder %s11, 0
      %p52 = por %p50, %p51
      %p53 = scmp.ne.s32.totalorder %s45, %s47
      %p54 = scmp.eq.s32.totalorder %s16, 1
      %p55 = por %p53, %p54
      %p56 = scmp.ne.s32.totalorder %s47, %s48
      %p57 = scmp.eq.s32.totalorder %s16, 0
      %p58 = por %p56, %p57
      %p59 = scmp.ne.s32.totalorder %s47, %s48
      %p60 = scmp.eq.s32.totalorder %s17, 1
      %p61 = por %p59, %p60
      %p63 = scmp.ne.s32.totalorder %s48, %s62
      %p64 = scmp.eq.s32.totalorder %s17, 0
      %p65 = por %p63, %p64
      %s66 = ssub.s32 %s11, %s18
      %p67 = scmp.eq.s32.totalorder %s66, 0
      %s69 = sadd.s32 %s68, 1
      %s70 = scalar_select %p67, %s68, %s69
      %p73 = pneg %p67
      %p74 = scmp.eq.s32.totalorder %s11, 1
      %p75 = por %p73, %p74
      %p76 = scmp.ne.s32.totalorder %s68, %s71
      %p77 = scmp.eq.s32.totalorder %s11, 0
      %p78 = por %p76, %p77
      %p79 = scmp.ne.s32.totalorder %s68, %s71
      %p80 = scmp.eq.s32.totalorder %s16, 1
      %p81 = por %p79, %p80
      %p82 = scmp.ne.s32.totalorder %s71, %s72
      %p83 = scmp.eq.s32.totalorder %s16, 0
      %p84 = por %p82, %p83
      %p85 = scmp.ne.s32.totalorder %s71, %s72
      %p86 = scmp.eq.s32.totalorder %s17, 1
      %p87 = por %p85, %p86
      %p89 = scmp.ne.s32.totalorder %s72, %s88
      %p90 = scmp.eq.s32.totalorder %s17, 0
      %p91 = por %p89, %p90
      %p92 = scmp.le.s32.totalorder 1, %s11
      %p93 = scmp.lt.s32.totalorder %s11, 3
      %p94 = pnand %p92, %p93
      %p95 = pneg %p94
      // Predicated region
      $region9: #{tpu_custom_call.1} parent=5 // pred_check
        _
      $region10: #{tpu_custom_call.1} parent=5 // pred_check_branch
        %97 = sbr.rel (%p94) target = $region12
      $region11: #{tpu_custom_call.1} parent=5 // pred_region
        %s98 = ssub.s32 %s11, 1
        // Predicated region
        $region13: #{tpu_custom_call.1} parent=11 // pred_check
          %p99 = pneg %p58
        $region14: #{tpu_custom_call.1} parent=11 // pred_check_branch
          %101 = sbr.rel (%p99) target = $region16
        $region15: #{tpu_custom_call.1} parent=11 // pred_region
          _
        $region16: #{tpu_custom_call.1} parent=11 // pred_fallthru
          _
      $region12: #{tpu_custom_call.1} parent=5 // pred_fallthru
        _
      %p102 = scmp.lt.s32.totalorder %s11, 2
      // Predicated region
      $region17: #{tpu_custom_call.1} parent=5 // pred_check
        %p103 = pneg %p102
      $region18: #{tpu_custom_call.1} parent=5 // pred_check_branch
        %105 = sbr.rel (%p103) target = $region20
      $region19: #{tpu_custom_call.1} parent=5 // pred_region
        // Predicated region
        $region21: #{tpu_custom_call.1} parent=19 // pred_check
          %p106 = pneg %p31
        $region22: #{tpu_custom_call.1} parent=19 // pred_check_branch
          %108 = sbr.rel (%p106) target = $region24
        $region23: #{tpu_custom_call.1} parent=19 // pred_region
          %s109 = smul.u32 32, %s11
          %p110 = scmp.lt.s32.totalorder %s109, 63
          %s111 = scalar_select %p110, %s109, 63
          %s112 = smul.addr %s111, 4
          %s113 = scalar_lea.vmem %s0, %s112
          %s114 = smul.u32 32, %s11
        $region24: #{tpu_custom_call.1} parent=19 // pred_fallthru
          _
      $region20: #{tpu_custom_call.1} parent=5 // pred_fallthru
        _
      %p115 = scmp.le.s32.totalorder 1, %s11
      %p116 = scmp.lt.s32.totalorder %s11, 3
      %p117 = pnand %p115, %p116
      %p118 = pneg %p117
      // Predicated region
      $region25: #{tpu_custom_call.1} parent=5 // pred_check
        _
      $region26: #{tpu_custom_call.1} parent=5 // pred_check_branch
        %120 = sbr.rel (%p117) target = $region28
      $region27: #{tpu_custom_call.1} parent=5 // pred_region
        %s121 = ssub.s32 %s11, 1
        %s122 = smul.u32 32, %s16
        %p123 = scmp.lt.s32.totalorder %s122, 63
        %s124 = scalar_select %p123, %s122, 63
        %s125 = smul.addr %s124, 4
        %s126 = scalar_lea.vmem %s0, %s125
        %p127 = pneg %p37
        %p128 = pneg %p34
        %p129 = pneg %p58
        %p130 = pneg %p55
        %p131 = pneg %p84
        %p132 = pneg %p81
        %s133 = sand.u32 %s71, 1
        %s134 = scalar_lea.sflag [#allocation3], %s133
        %s135 = sand.u32 %s71, 1
        %s136 = smul.addr %s135, 128
        %s137 = scalar_lea.vmem [#allocation2], %s136
        %s138 = smul.u32 32, %s16
        %p139 = scmp.lt.s32.totalorder %s138, 63
        %s140 = scalar_select %p139, %s138, 63
        %s141 = smul.addr %s140, 4
        %s142 = scalar_lea.vmem %s0, %s141
        %s143 = smul.u32 32, %s16
        %s144 = smul.u32 32, %s16
        %v146 = vld [vmem:[%s142] sm:$0xf]
        %v147 = vld [vmem:[%s142 + $0x4] sm:$0xf]
        %v148 = vld [vmem:[%s142 + $0x8] sm:$0xf]
        %v149 = vld [vmem:[%s142 + $0xc] sm:$0xf]
        %v150 = vld [vmem:[%s142 + $0x10] sm:$0xf]
        %v151 = vld [vmem:[%s142 + $0x14] sm:$0xf]
        %v152 = vld [vmem:[%s142 + $0x18] sm:$0xf]
        %v153 = vld [vmem:[%s142 + $0x1c] sm:$0xf]
        %v154 = vld [vmem:[%s142 + $0x20] sm:$0xf]
        %v155 = vld [vmem:[%s142 + $0x24] sm:$0xf]
        %v156 = vld [vmem:[%s142 + $0x28] sm:$0xf]
        %v157 = vld [vmem:[%s142 + $0x2c] sm:$0xf]
        %v158 = vld [vmem:[%s142 + $0x30] sm:$0xf]
        %v159 = vld [vmem:[%s142 + $0x34] sm:$0xf]
        %v160 = vld [vmem:[%s142 + $0x38] sm:$0xf]
        %v161 = vld [vmem:[%s142 + $0x3c] sm:$0xf]
        %v162 = vld [vmem:[%s142 + $0x40] sm:$0xf]
        %v163 = vld [vmem:[%s142 + $0x44] sm:$0xf]
        %v164 = vld [vmem:[%s142 + $0x48] sm:$0xf]
        %v165 = vld [vmem:[%s142 + $0x4c] sm:$0xf]
        %v166 = vld [vmem:[%s142 + $0x50] sm:$0xf]
        %v167 = vld [vmem:[%s142 + $0x54] sm:$0xf]
        %v168 = vld [vmem:[%s142 + $0x58] sm:$0xf]
        %v169 = vld [vmem:[%s142 + $0x5c] sm:$0xf]
        %v170 = vld [vmem:[%s142 + $0x60] sm:$0xf]
        %v171 = vld [vmem:[%s142 + $0x64] sm:$0xf]
        %v172 = vld [vmem:[%s142 + $0x68] sm:$0xf]
        %v173 = vld [vmem:[%s142 + $0x6c] sm:$0xf]
        %v174 = vld [vmem:[%s142 + $0x70] sm:$0xf]
        %v175 = vld [vmem:[%s142 + $0x74] sm:$0xf]
        %v176 = vld [vmem:[%s142 + $0x78] sm:$0xf]
        %v177 = vld [vmem:[%s142 + $0x7c] sm:$0xf]
        %v178 = vld [vmem:[%s1] sm:$0xf]
        %v179 = vld [vmem:[%s1 + $0x4] sm:$0xf]
        %v180 = vld [vmem:[%s1 + $0x8] sm:$0xf]
        %v181 = vld [vmem:[%s1 + $0xc] sm:$0xf]
        %v214 = vunpack.c.l.b16 %v146
        %v215 = vunpack.c.l.b16 %v147
        %v216 = vunpack.c.l.b16 %v148
        %v217 = vunpack.c.l.b16 %v149
        %v218 = vunpack.c.l.b16 %v150
        %v219 = vunpack.c.l.b16 %v151
        %v220 = vunpack.c.l.b16 %v152
        %v221 = vunpack.c.l.b16 %v153
        %v222 = vunpack.c.l.b16 %v154
        %v223 = vunpack.c.l.b16 %v155
        %v224 = vunpack.c.l.b16 %v156
        %v225 = vunpack.c.l.b16 %v157
        %v226 = vunpack.c.l.b16 %v158
        %v227 = vunpack.c.l.b16 %v159
        %v228 = vunpack.c.l.b16 %v160
        %v229 = vunpack.c.l.b16 %v161
        %v230 = vunpack.c.l.b16 %v162
        %v231 = vunpack.c.l.b16 %v163
        %v232 = vunpack.c.l.b16 %v164
        %v233 = vunpack.c.l.b16 %v165
        %v234 = vunpack.c.l.b16 %v166
        %v235 = vunpack.c.l.b16 %v167
        %v236 = vunpack.c.l.b16 %v168
        %v237 = vunpack.c.l.b16 %v169
        %v238 = vunpack.c.l.b16 %v170
        %v239 = vunpack.c.l.b16 %v171
        %v240 = vunpack.c.l.b16 %v172
        %v241 = vunpack.c.l.b16 %v173
        %v242 = vunpack.c.l.b16 %v174
        %v243 = vunpack.c.l.b16 %v175
        %v244 = vunpack.c.l.b16 %v176
        %v245 = vunpack.c.l.b16 %v177
        %v246 = vpack.c.b16 %v215, %v214
        %v247 = vpack.c.b16 %v217, %v216
        %v248 = vpack.c.b16 %v219, %v218
        %v249 = vpack.c.b16 %v221, %v220
        %v250 = vpack.c.b16 %v223, %v222
        %v251 = vpack.c.b16 %v225, %v224
        %v252 = vpack.c.b16 %v227, %v226
        %v253 = vpack.c.b16 %v229, %v228
        %v254 = vpack.c.b16 %v231, %v230
        %v255 = vpack.c.b16 %v233, %v232
        %v256 = vpack.c.b16 %v235, %v234
        %v257 = vpack.c.b16 %v237, %v236
        %v258 = vpack.c.b16 %v239, %v238
        %v259 = vpack.c.b16 %v241, %v240
        %v260 = vpack.c.b16 %v243, %v242
        %v261 = vpack.c.b16 %v245, %v244
        %v266 = vunpack.c.l.b16 %v178
        %v267 = vunpack.c.l.b16 %v179
        %v268 = vunpack.c.l.b16 %v180
        %v269 = vunpack.c.l.b16 %v181
        %v270 = vpack.c.b16 %v267, %v266
        %v271 = vpack.c.b16 %v269, %v268
        %vm274 = vcmask 261120
        %v276 = vsel %vm274, %v246, 0
        %v279 = vsel %vm274, %v247, 0
        %v282 = vsel %vm274, %v248, 0
        %v285 = vsel %vm274, %v249, 0
        %v288 = vsel %vm274, %v250, 0
        %v291 = vsel %vm274, %v251, 0
        %v294 = vsel %vm274, %v252, 0
        %v297 = vsel %vm274, %v253, 0
        %v300 = vsel %vm274, %v254, 0
        %v303 = vsel %vm274, %v255, 0
        %v306 = vsel %vm274, %v256, 0
        %v309 = vsel %vm274, %v257, 0
        %v312 = vsel %vm274, %v258, 0
        %v315 = vsel %vm274, %v259, 0
        %v318 = vsel %vm274, %v260, 0
        %v321 = vsel %vm274, %v261, 0
        %323 = vmatpush.bf16.msra.mxu0 0
        %324 = vmatpush.bf16.msra.mxu0 0
        %325 = vmatpush.bf16.msra.mxu0 0
        %326 = vmatpush.bf16.msra.mxu0 0
        %327 = vmatpush.bf16.msra.mxu0 0
        %328 = vmatpush.bf16.msra.mxu0 0
        %329 = vmatpush.bf16.msra.mxu0 %v271
        %330 = vmatpush.bf16.msra.mxu0 %v270
        %331 = vmatmul.bf16.gmra.mxu0 %v276
        %v332 = vpop.f32.mrf.mxu0
        %v333 = vadd.f32 0.0, %v332
        %v334 = vpop.f32.mrf.mxu0
        %v335 = vadd.f32 0.0, %v334
        %336 = vmatmul.bf16.gmra.mxu0 %v279
        %v337 = vpop.f32.mrf.mxu0
        %v338 = vadd.f32 0.0, %v337
        %v339 = vpop.f32.mrf.mxu0
        %v340 = vadd.f32 0.0, %v339
        %341 = vmatmul.bf16.gmra.mxu0 %v282
        %v342 = vpop.f32.mrf.mxu0
        %v343 = vadd.f32 0.0, %v342
        %v344 = vpop.f32.mrf.mxu0
        %v345 = vadd.f32 0.0, %v344
        %346 = vmatmul.bf16.gmra.mxu0 %v285
        %v347 = vpop.f32.mrf.mxu0
        %v348 = vadd.f32 0.0, %v347
        %v349 = vpop.f32.mrf.mxu0
        %v350 = vadd.f32 0.0, %v349
        %351 = vmatmul.bf16.gmra.mxu0 %v288
        %v352 = vpop.f32.mrf.mxu0
        %v353 = vadd.f32 0.0, %v352
        %v354 = vpop.f32.mrf.mxu0
        %v355 = vadd.f32 0.0, %v354
        %356 = vmatmul.bf16.gmra.mxu0 %v291
        %v357 = vpop.f32.mrf.mxu0
        %v358 = vadd.f32 0.0, %v357
        %v359 = vpop.f32.mrf.mxu0
        %v360 = vadd.f32 0.0, %v359
        %361 = vmatmul.bf16.gmra.mxu0 %v294
        %v362 = vpop.f32.mrf.mxu0
        %v363 = vadd.f32 0.0, %v362
        %v364 = vpop.f32.mrf.mxu0
        %v365 = vadd.f32 0.0, %v364
        %366 = vmatmul.bf16.gmra.mxu0 %v297
        %v367 = vpop.f32.mrf.mxu0
        %v368 = vadd.f32 0.0, %v367
        %v369 = vpop.f32.mrf.mxu0
        %v370 = vadd.f32 0.0, %v369
        %371 = vmatmul.bf16.gmra.mxu0 %v300
        %v372 = vpop.f32.mrf.mxu0
        %v373 = vadd.f32 0.0, %v372
        %v374 = vpop.f32.mrf.mxu0
        %v375 = vadd.f32 0.0, %v374
        %376 = vmatmul.bf16.gmra.mxu0 %v303
        %v377 = vpop.f32.mrf.mxu0
        %v378 = vadd.f32 0.0, %v377
        %v379 = vpop.f32.mrf.mxu0
        %v380 = vadd.f32 0.0, %v379
        %381 = vmatmul.bf16.gmra.mxu0 %v306
        %v382 = vpop.f32.mrf.mxu0
        %v383 = vadd.f32 0.0, %v382
        %v384 = vpop.f32.mrf.mxu0
        %v385 = vadd.f32 0.0, %v384
        %386 = vmatmul.bf16.gmra.mxu0 %v309
        %v387 = vpop.f32.mrf.mxu0
        %v388 = vadd.f32 0.0, %v387
        %v389 = vpop.f32.mrf.mxu0
        %v390 = vadd.f32 0.0, %v389
        %391 = vmatmul.bf16.gmra.mxu0 %v312
        %v392 = vpop.f32.mrf.mxu0
        %v393 = vadd.f32 0.0, %v392
        %v394 = vpop.f32.mrf.mxu0
        %v395 = vadd.f32 0.0, %v394
        %396 = vmatmul.bf16.gmra.mxu0 %v315
        %v397 = vpop.f32.mrf.mxu0
        %v398 = vadd.f32 0.0, %v397
        %v399 = vpop.f32.mrf.mxu0
        %v400 = vadd.f32 0.0, %v399
        %401 = vmatmul.bf16.gmra.mxu0 %v318
        %v402 = vpop.f32.mrf.mxu0
        %v403 = vadd.f32 0.0, %v402
        %v404 = vpop.f32.mrf.mxu0
        %v405 = vadd.f32 0.0, %v404
        %406 = vmatmul.bf16.gmra.mxu0 %v321
        %v407 = vpop.f32.mrf.mxu0
        %v408 = vadd.f32 0.0, %v407
        %v409 = vpop.f32.mrf.mxu0
        %v410 = vadd.f32 0.0, %v409
        %411 = vdwg.mxu0
        %v412 = vpack.c.bf16 %v333, %v333
        %v413 = vpack.c.bf16 %v335, %v335
        %v414 = vpack.c.bf16 %v338, %v338
        %v415 = vpack.c.bf16 %v340, %v340
        %v416 = vpack.c.bf16 %v343, %v343
        %v417 = vpack.c.bf16 %v345, %v345
        %v418 = vpack.c.bf16 %v348, %v348
        %v419 = vpack.c.bf16 %v350, %v350
        %v420 = vpack.c.bf16 %v353, %v353
        %v421 = vpack.c.bf16 %v355, %v355
        %v422 = vpack.c.bf16 %v358, %v358
        %v423 = vpack.c.bf16 %v360, %v360
        %v424 = vpack.c.bf16 %v363, %v363
        %v425 = vpack.c.bf16 %v365, %v365
        %v426 = vpack.c.bf16 %v368, %v368
        %v427 = vpack.c.bf16 %v370, %v370
        %v428 = vpack.c.bf16 %v373, %v373
        %v429 = vpack.c.bf16 %v375, %v375
        %v430 = vpack.c.bf16 %v378, %v378
        %v431 = vpack.c.bf16 %v380, %v380
        %v432 = vpack.c.bf16 %v383, %v383
        %v433 = vpack.c.bf16 %v385, %v385
        %v434 = vpack.c.bf16 %v388, %v388
        %v435 = vpack.c.bf16 %v390, %v390
        %v436 = vpack.c.bf16 %v393, %v393
        %v437 = vpack.c.bf16 %v395, %v395
        %v438 = vpack.c.bf16 %v398, %v398
        %v439 = vpack.c.bf16 %v400, %v400
        %v440 = vpack.c.bf16 %v403, %v403
        %v441 = vpack.c.bf16 %v405, %v405
        %v442 = vpack.c.bf16 %v408, %v408
        %v443 = vpack.c.bf16 %v410, %v410
        %444 = vst [vmem:[%s137] sm:$0xf] %v412
        %445 = vst [vmem:[%s137 + $0x4] sm:$0xf] %v413
        %446 = vst [vmem:[%s137 + $0x8] sm:$0xf] %v414
        %447 = vst [vmem:[%s137 + $0xc] sm:$0xf] %v415
        %448 = vst [vmem:[%s137 + $0x10] sm:$0xf] %v416
        %449 = vst [vmem:[%s137 + $0x14] sm:$0xf] %v417
        %450 = vst [vmem:[%s137 + $0x18] sm:$0xf] %v418
        %451 = vst [vmem:[%s137 + $0x1c] sm:$0xf] %v419
        %452 = vst [vmem:[%s137 + $0x20] sm:$0xf] %v420
        %453 = vst [vmem:[%s137 + $0x24] sm:$0xf] %v421
        %454 = vst [vmem:[%s137 + $0x28] sm:$0xf] %v422
        %455 = vst [vmem:[%s137 + $0x2c] sm:$0xf] %v423
        %456 = vst [vmem:[%s137 + $0x30] sm:$0xf] %v424
        %457 = vst [vmem:[%s137 + $0x34] sm:$0xf] %v425
        %458 = vst [vmem:[%s137 + $0x38] sm:$0xf] %v426
        %459 = vst [vmem:[%s137 + $0x3c] sm:$0xf] %v427
        %460 = vst [vmem:[%s137 + $0x40] sm:$0xf] %v428
        %461 = vst [vmem:[%s137 + $0x44] sm:$0xf] %v429
        %462 = vst [vmem:[%s137 + $0x48] sm:$0xf] %v430
        %463 = vst [vmem:[%s137 + $0x4c] sm:$0xf] %v431
        %464 = vst [vmem:[%s137 + $0x50] sm:$0xf] %v432
        %465 = vst [vmem:[%s137 + $0x54] sm:$0xf] %v433
        %466 = vst [vmem:[%s137 + $0x58] sm:$0xf] %v434
        %467 = vst [vmem:[%s137 + $0x5c] sm:$0xf] %v435
        %468 = vst [vmem:[%s137 + $0x60] sm:$0xf] %v436
        %469 = vst [vmem:[%s137 + $0x64] sm:$0xf] %v437
        %470 = vst [vmem:[%s137 + $0x68] sm:$0xf] %v438
        %471 = vst [vmem:[%s137 + $0x6c] sm:$0xf] %v439
        %472 = vst [vmem:[%s137 + $0x70] sm:$0xf] %v440
        %473 = vst [vmem:[%s137 + $0x74] sm:$0xf] %v441
        %474 = vst [vmem:[%s137 + $0x78] sm:$0xf] %v442
        %475 = vst [vmem:[%s137 + $0x7c] sm:$0xf] %v443
        %s476 = sand.u32 %s71, 1
        %s477 = scalar_lea.sflag [#allocation3], %s476
        %s478 = sand.u32 %s71, 1
        %s479 = smul.addr %s478, 128
        %s480 = scalar_lea.vmem [#allocation2], %s479
        // Predicated region
        $region29: #{tpu_custom_call.1} parent=27 // pred_check
          %p481 = pneg %p81
        $region30: #{tpu_custom_call.1} parent=27 // pred_check_branch
          %483 = sbr.rel (%p481) target = $region32
        $region31: #{tpu_custom_call.1} parent=27 // pred_region
          %s484 = smul.u32 32, %s16
          %486 = vsyncadd %s477, 0
          %s487 = smul.addr %s484, 4
          %s488 = scalar_lea.hbm %s2, %s487
          %s489 = sshll.u32 %s480, 4
          %s490 = int_to_ptr.vmem [resolvable:$true] %s489
          %s491 = sshll.u32 %s488, 4
          %s492 = int_to_ptr.hbm [resolvable:$true] %s491
          %497 = dma.vmem_to_hbm [thread:$0]  %s490, 2048, %s492, %s477, 64, 64, 4
        $region32: #{tpu_custom_call.1} parent=27 // pred_fallthru
          _
      $region28: #{tpu_custom_call.1} parent=5 // pred_fallthru
        _
      %p498 = scmp.le.s32.totalorder 2, %s11
      // Predicated region
      $region33: #{tpu_custom_call.1} parent=5 // pred_check
        %p499 = pneg %p498
      $region34: #{tpu_custom_call.1} parent=5 // pred_check_branch
        %501 = sbr.rel (%p499) target = $region36
      $region35: #{tpu_custom_call.1} parent=5 // pred_region
        %s502 = ssub.s32 %s11, 2
        // Predicated region
        $region37: #{tpu_custom_call.1} parent=35 // pred_check
          %p503 = pneg %p87
        $region38: #{tpu_custom_call.1} parent=35 // pred_check_branch
          %505 = sbr.rel (%p503) target = $region40
        $region39: #{tpu_custom_call.1} parent=35 // pred_region
          %s506 = sand.u32 %s72, 1
          %s507 = scalar_lea.sflag [#allocation3], %s506
          %s508 = sand.u32 %s72, 1
          %s509 = smul.addr %s508, 128
          %s510 = scalar_lea.vmem [#allocation2], %s509
          %512 = dma.done %s507, 2048
        $region40: #{tpu_custom_call.1} parent=35 // pred_fallthru
          _
      $region36: #{tpu_custom_call.1} parent=5 // pred_fallthru
        _
    $region6: #{tpu_custom_call.1} parent=1 // loop_footer
      %s15 = sadd.s32 1, %s11
    $region7: #{tpu_custom_call.1} parent=1 // loop_footer_branch
      %10 = sbr.rel target = $region3
    $region8: #{tpu_custom_call.1} parent=1 // loop_exit
      _
    %513 = vsyncpa [#allocation3], 1
    %s514 = scalar_lea.sflag [#allocation3], 1
    %515 = vsyncpa %s514, 1

</llo_original>
